<compile_context>
chip_gen: v5e
topology: v5e:2x2
jax: 0.10.0
libtpu: 0.0.40
codegen_flags: <defaults>
</compile_context>

<pallas_src>
import functools
import math

import jax
import jax.numpy as jnp
from jax.experimental import pallas as pl
from jax.experimental.pallas import tpu as pltpu
from jax.scipy.special import gammaln, digamma

EPS = 1e-8
_HALF_LOG_2PI = 0.9189385332046727  # 0.5 * log(2*pi)


def _round_up(x, m):
    return ((x + m - 1) // m) * m


# ---- host-side (double precision) digamma for constant folding --------------
def _host_digamma(x):
    x = float(x)
    acc = 0.0
    while x < 10.0:           # psi(x) = psi(x+1) - 1/x
        acc -= 1.0 / x
        x += 1.0
    xi = 1.0 / x
    xi2 = xi * xi
    series = xi2 * (1.0 / 12.0 - xi2 * (1.0 / 120.0
                    - xi2 * (1.0 / 252.0 - xi2 * (1.0 / 240.0))))
    return acc + math.log(x) - 0.5 * xi - series


# ---- in-kernel lgamma (positive arguments only) ------------------------------
# Shift-by-4 recurrence with the 4 EUP logs folded into 2 logs of pairwise
# products, then Stirling series at z = x + 4 through z^-7 (truncation ~3e-9).
# 1/z uses the approximate EUP reciprocal; its ~2^-12 error only perturbs the
# 1/(12z) series term (negligible vs. f32 eps on the final lgamma value).
def _lgamma_pos(x):
    shift = jnp.log(x * (x + 1.0)) + jnp.log((x + 2.0) * (x + 3.0))
    z = x + 4.0
    zinv = pl.reciprocal(z, approx=True)
    zinv2 = zinv * zinv
    series = zinv * (1.0 / 12.0 + zinv2 * (-1.0 / 360.0
                     + zinv2 * (1.0 / 1260.0 - zinv2 * (1.0 / 1680.0))))
    return (z - 0.5) * jnp.log(z) - z + _HALF_LOG_2PI + series - shift


# ---- the Pallas kernel --------------------------------------------------------
# Emits, per batch row:
#   partial   = sum_c lgamma(conc+eps) + loss_const - dphi_off*precision
#               - dphi_delta*conc_at_label
#   precision = sum_c conc
# with conc = exp(logits + gain) (softmax folded away: mean*precision == conc).
# The final  loss_row = partial - lgamma(precision+eps)  and the batch mean are
# done in the tiny XLA epilogue (B elements only).
def _dirichlet_kl_kernel(logits_ref, gain_ref, labels_ref, partial_ref, prec_ref,
                         *, loss_const, dphi_off, dphi_delta):
    logits = logits_ref[...].astype(jnp.float32)   # (tb, C)  in-kernel cast
    gain = gain_ref[...].astype(jnp.float32)       # (tb, 1)
    tb, c = logits.shape

    conc = jnp.exp(logits + gain)                                  # (tb, C)
    precision = jnp.sum(conc, axis=1, keepdims=True)               # (tb, 1)
    sum_lg = jnp.sum(_lgamma_pos(conc + EPS), axis=1, keepdims=True)

    partial = sum_lg + (loss_const - dphi_off * precision)
    if dphi_delta != 0.0:   # trace-time constant; skipped for out-of-domain
        labels = labels_ref[...]                                   # (tb, 1) int32
        lane = jax.lax.broadcasted_iota(jnp.int32, (tb, c), 1)
        conc_lab = jnp.sum(jnp.where(lane == labels, conc, 0.0),
                           axis=1, keepdims=True)                  # (tb, 1)
        partial = partial - dphi_delta * conc_lab

    partial_ref[...] = partial
    prec_ref[...] = precision


# ---- tile sizing --------------------------------------------------------------
def _pick_tile_b(batch, c_phys, itemsize, requested):
    mult = {4: 8, 2: 16, 1: 32}.get(int(itemsize), 8)   # native sublane tiling
    if requested is not None:
        tile = max(mult, _round_up(int(requested), mult))
    else:
        # ~512 KiB of f32 working width per tile (amortizes ~0.35us/step), capped
        # so 2x double-buffered input + ~5 f32 temps stay well under 12 MiB
        # (inside v5e's 16 MiB default scoped-VMEM and v7x's 32 MiB).
        want = max(mult, ((512 * 1024) // (c_phys * 4)) // mult * mult)
        cap = max(mult, ((12 << 20) // (c_phys * (2 * itemsize + 20))) // mult * mult)
        tile = min(want, cap, 1024)
        # >= 2 grid steps when the batch allows it (v7x has 2 TensorCores and the
        # batch axis is marked "parallel").
        tile = min(tile, max(mult, _round_up((batch + 1) // 2, mult)))
    return min(tile, _round_up(batch, mult))


# ---- wrapper ------------------------------------------------------------------
def dirichlet_kl_div(logits, gain, labels, *, alpha, smoothing=0.01,
                     in_domain=True, tile_b=None):
    B, C = logits.shape
    c_phys = max(128, _round_up(C, 128))
    itemsize = jnp.dtype(logits.dtype).itemsize
    tb = _pick_tile_b(B, c_phys, itemsize, tile_b)
    num_tiles = pl.cdiv(B, tb)

    # Constant-fold every target-side special function at trace time.
    if in_domain:
        if smoothing < EPS:
            tmean_on, tmean_off = 1.0, 0.0
        else:
            tmean_on = (1.0 - C * smoothing) + smoothing      # label-class value
            tmean_off = smoothing
        tprec = float(alpha)
    else:
        tmean_on = tmean_off = 1.0 / C
        tprec = float(C)
    tconc_on = tmean_on * tprec
    tconc_off = tmean_off * tprec
    lg_tprec = math.lgamma(tprec + EPS)
    lg_trow = math.lgamma(tconc_on + EPS) + (C - 1) * math.lgamma(tconc_off + EPS)
    dig_tprec = _host_digamma(tprec + EPS)
    dphi_on = _host_digamma(tconc_on + EPS) - dig_tprec
    dphi_off = _host_digamma(tconc_off + EPS) - dig_tprec
    dprod_const = tconc_on * dphi_on + (C - 1) * tconc_off * dphi_off
    loss_const = lg_tprec - lg_trow + dprod_const
    dphi_delta = dphi_on - dphi_off

    gain2d = gain.reshape(B, 1)                       # metadata-only reshapes
    labels2d = labels.reshape(B).astype(jnp.int32).reshape(B, 1)

    kernel = functools.partial(
        _dirichlet_kl_kernel,
        loss_const=float(loss_const), dphi_off=float(dphi_off),
        dphi_delta=float(dphi_delta))

    partial, precision = pl.pallas_call(
        kernel,
        out_shape=(jax.ShapeDtypeStruct((B, 1), jnp.float32),
                   jax.ShapeDtypeStruct((B, 1), jnp.float32)),
        grid_spec=pltpu.PrefetchScalarGridSpec(
            num_scalar_prefetch=0,
            grid=(num_tiles,),
            # Full class extent in the block (legal: last block dim == array dim)
            # -> no host-side padding / extra HBM copy of logits.
            in_specs=[pl.BlockSpec((tb, C), lambda i: (i, 0)),
                      pl.BlockSpec((tb, 1), lambda i: (i, 0)),
                      pl.BlockSpec((tb, 1), lambda i: (i, 0))],
            out_specs=[pl.BlockSpec((tb, 1), lambda i: (i, 0)),
                       pl.BlockSpec((tb, 1), lambda i: (i, 0))]),
        compiler_params=pltpu.CompilerParams(
            dimension_semantics=("parallel",)),
    )(logits, gain2d, labels2d)

    # Tiny XLA epilogue: B-element lgamma(precision) + batch mean.  Keeps the
    # lane-wasteful per-row lgamma out of the EUP-bound kernel entirely.
    return jnp.mean(partial - gammaln(precision + EPS))


# ---- pure-JAX reference (mirrors the PyTorch code, incl. the (B,B) broadcast) --
def _ref_loss(logits, gain, labels, *, alpha, smoothing=0.01, in_domain=True):
    logits = logits.astype(jnp.float32)
    gain = gain.reshape(-1, 1).astype(jnp.float32)
    B, C = logits.shape
    mean = jax.nn.softmax(logits, axis=1)
    precision = jnp.sum(jnp.exp(logits + gain), axis=1, keepdims=True)
    if in_domain:
        one_hot = jax.nn.one_hot(labels, C, dtype=jnp.float32)
        target_mean = one_hot if smoothing < EPS else (1.0 - C * smoothing) * one_hot + smoothing
        target_precision = alpha * jnp.ones((B, 1), jnp.float32)
    else:
        target_mean = jnp.full((B, C), 1.0 / C, jnp.float32)
        target_precision = float(C) * jnp.ones((B, 1), jnp.float32)
    eps = EPS
    dlgamma = gammaln(target_precision + eps) - gammaln(precision + eps)        # (B,1)
    dsumlgamma = jnp.sum(gammaln(mean * precision + eps)
                         - gammaln(target_mean * target_precision + eps), axis=1)  # (B,)
    dconc = target_precision * target_mean - precision * mean
    dphiconc = digamma(target_mean * target_precision + eps) - digamma(target_precision + eps)
    dprod = jnp.sum(dconc * dphiconc, axis=1)                                   # (B,)
    # Same (B,1)+(B,) -> (B,B) broadcast + mean as the PyTorch module.
    return jnp.mean(dlgamma + dsumlgamma + dprod)


if __name__ == "__main__":
    ALPHA, SMOOTHING = 15.0, 0.01

    # Case 1: small in-domain shapes (batch=8, num_classes=16).
    k1, k2, k3 = jax.random.split(jax.random.PRNGKey(0), 3)
    B, C = 8, 16
    logits = jax.random.normal(k1, (B, C), dtype=jnp.float32)
    gain = jax.random.normal(k2, (B, 1), dtype=jnp.float32) * 0.1
    labels = jax.random.randint(k3, (B,), 0, C, dtype=jnp.int32)

    loss = jax.block_until_ready(
        dirichlet_kl_div(logits, gain, labels,
                         alpha=ALPHA, smoothing=SMOOTHING, in_domain=True))
    ref = _ref_loss(logits, gain, labels,
                    alpha=ALPHA, smoothing=SMOOTHING, in_domain=True)
    assert jnp.allclose(loss, ref, rtol=2e-3, atol=2e-3), (loss, ref)

    # Case 2: non-aligned shapes (batch=200, classes=37), out-of-domain branch,
    # multi-tile grid (tile_b=64) with a ragged tail block, bf16 logits cast
    # in-kernel, no host-side padding.
    k4, k5, k6 = jax.random.split(jax.random.PRNGKey(0), 3)
    B2, C2 = 200, 37
    logits2 = jax.random.normal(k4, (B2, C2), dtype=jnp.float32).astype(jnp.bfloat16)
    gain2 = jax.random.normal(k5, (B2, 1), dtype=jnp.float32) * 0.1
    labels2 = jax.random.randint(k6, (B2,), 0, C2, dtype=jnp.int32)

    loss2 = jax.block_until_ready(
        dirichlet_kl_div(logits2, gain2, labels2,
                         alpha=ALPHA, smoothing=SMOOTHING, in_domain=False, tile_b=64))
    ref2 = _ref_loss(logits2, gain2, labels2,
                     alpha=ALPHA, smoothing=SMOOTHING, in_domain=False)
    assert jnp.allclose(loss2, ref2, rtol=2e-3, atol=2e-3), (loss2, ref2)

    print("KERNEL_OK")
</pallas_src>

<mosaic_0001>
module attributes {stable_mosaic.version = 11 : i64} {
  func.func @_dirichlet_kl_kernel(%arg0: i32, %arg1: memref<8x16xf32, #tpu.memory_space<vmem>>, %arg2: memref<8x1xf32, #tpu.memory_space<vmem>>, %arg3: memref<8x1xi32, #tpu.memory_space<vmem>>, %arg4: memref<8x1xf32, #tpu.memory_space<vmem>>, %arg5: memref<8x1xf32, #tpu.memory_space<vmem>>) attributes {dimension_semantics = [#tpu.dimension_semantics<parallel>], iteration_bounds = array<i64: 1>, scalar_prefetch = 0 : i64, scratch_operands = 0 : i64, tpu.core_type = #tpu.core_type<tc>, window_params = [{transform_indices = @transform_0, window_bounds = array<i64: 8, 16>}, {transform_indices = @transform_1, window_bounds = array<i64: 8, 1>}, {transform_indices = @transform_2, window_bounds = array<i64: 8, 1>}, {transform_indices = @transform_3, window_bounds = array<i64: 8, 1>}, {transform_indices = @transform_4, window_bounds = array<i64: 8, 1>}]} {
    %c0 = arith.constant 0 : index
    %c0_0 = arith.constant 0 : index
    %0 = vector.load %arg1[%c0, %c0_0] : memref<8x16xf32, #tpu.memory_space<vmem>>, vector<8x16xf32>
    %c0_1 = arith.constant 0 : index
    %c0_2 = arith.constant 0 : index
    %1 = vector.load %arg2[%c0_1, %c0_2] : memref<8x1xf32, #tpu.memory_space<vmem>>, vector<8x1xf32>
    %2 = vector.broadcast %1 : vector<8x1xf32> to vector<8x16xf32>
    %3 = arith.addf %0, %2 : vector<8x16xf32>
    %4 = math.exp %3 : vector<8x16xf32>
    %cst = arith.constant dense<0.000000e+00> : vector<8xf32>
    %5 = vector.multi_reduction <add>, %4, %cst [1] : vector<8x16xf32> to vector<8xf32>
    %6 = vector.shape_cast %5 : vector<8xf32> to vector<8x1xf32>
    %cst_3 = arith.constant 9.99999993E-9 : f32
    %7 = vector.broadcast %cst_3 : f32 to vector<8x16xf32>
    %8 = arith.addf %4, %7 : vector<8x16xf32>
    %cst_4 = arith.constant 1.000000e+00 : f32
    %9 = vector.broadcast %cst_4 : f32 to vector<8x16xf32>
    %10 = arith.addf %8, %9 : vector<8x16xf32>
    %11 = arith.mulf %8, %10 : vector<8x16xf32>
    %12 = math.log %11 : vector<8x16xf32>
    %cst_5 = arith.constant 2.000000e+00 : f32
    %13 = vector.broadcast %cst_5 : f32 to vector<8x16xf32>
    %14 = arith.addf %8, %13 : vector<8x16xf32>
    %cst_6 = arith.constant 3.000000e+00 : f32
    %15 = vector.broadcast %cst_6 : f32 to vector<8x16xf32>
    %16 = arith.addf %8, %15 : vector<8x16xf32>
    %17 = arith.mulf %14, %16 : vector<8x16xf32>
    %18 = math.log %17 : vector<8x16xf32>
    %19 = arith.addf %12, %18 : vector<8x16xf32>
    %cst_7 = arith.constant 4.000000e+00 : f32
    %20 = vector.broadcast %cst_7 : f32 to vector<8x16xf32>
    %21 = arith.addf %8, %20 : vector<8x16xf32>
    %22 = tpu.reciprocal %21 {approx = true} : vector<8x16xf32> -> vector<8x16xf32>
    %23 = arith.mulf %22, %22 : vector<8x16xf32>
    %cst_8 = arith.constant 5.95238118E-4 : f32
    %24 = vector.broadcast %cst_8 : f32 to vector<8x16xf32>
    %25 = arith.mulf %23, %24 : vector<8x16xf32>
    %cst_9 = arith.constant 7.93650805E-4 : f32
    %26 = vector.broadcast %cst_9 : f32 to vector<8x16xf32>
    %27 = arith.subf %26, %25 : vector<8x16xf32>
    %28 = arith.mulf %23, %27 : vector<8x16xf32>
    %cst_10 = arith.constant -0.00277777785 : f32
    %29 = vector.broadcast %cst_10 : f32 to vector<8x16xf32>
    %30 = arith.addf %29, %28 : vector<8x16xf32>
    %31 = arith.mulf %23, %30 : vector<8x16xf32>
    %cst_11 = arith.constant 0.0833333358 : f32
    %32 = vector.broadcast %cst_11 : f32 to vector<8x16xf32>
    %33 = arith.addf %32, %31 : vector<8x16xf32>
    %34 = arith.mulf %22, %33 : vector<8x16xf32>
    %cst_12 = arith.constant 5.000000e-01 : f32
    %35 = vector.broadcast %cst_12 : f32 to vector<8x16xf32>
    %36 = arith.subf %21, %35 : vector<8x16xf32>
    %37 = math.log %21 : vector<8x16xf32>
    %38 = arith.mulf %36, %37 : vector<8x16xf32>
    %39 = arith.subf %38, %21 : vector<8x16xf32>
    %cst_13 = arith.constant 0.918938517 : f32
    %40 = vector.broadcast %cst_13 : f32 to vector<8x16xf32>
    %41 = arith.addf %39, %40 : vector<8x16xf32>
    %42 = arith.addf %41, %34 : vector<8x16xf32>
    %43 = arith.subf %42, %19 : vector<8x16xf32>
    %cst_14 = arith.constant dense<0.000000e+00> : vector<8xf32>
    %44 = vector.multi_reduction <add>, %43, %cst_14 [1] : vector<8x16xf32> to vector<8xf32>
    %45 = vector.shape_cast %44 : vector<8xf32> to vector<8x1xf32>
    %cst_15 = arith.constant -9.6953392 : f32
    %46 = vector.broadcast %cst_15 : f32 to vector<8x1xf32>
    %47 = arith.mulf %46, %6 : vector<8x1xf32>
    %cst_16 = arith.constant -45.547657 : f32
    %48 = vector.broadcast %cst_16 : f32 to vector<8x1xf32>
    %49 = arith.subf %48, %47 : vector<8x1xf32>
    %50 = arith.addf %45, %49 : vector<8x1xf32>
    %c0_17 = arith.constant 0 : index
    %c0_18 = arith.constant 0 : index
    %51 = vector.load %arg3[%c0_17, %c0_18] : memref<8x1xi32, #tpu.memory_space<vmem>>, vector<8x1xi32>
    %52 = tpu.iota {dimensions = array<i32: 1>} : vector<8x16xi32>
    %53 = vector.broadcast %51 : vector<8x1xi32> to vector<8x16xi32>
    %54 = arith.cmpi eq, %52, %53 : vector<8x16xi32>
    %cst_19 = arith.constant 0.000000e+00 : f32
    %55 = vector.broadcast %cst_19 : f32 to vector<8x16xf32>
    %56 = arith.select %54, %4, %55 : vector<8x16xi1>, vector<8x16xf32>
    %cst_20 = arith.constant dense<0.000000e+00> : vector<8xf32>
    %57 = vector.multi_reduction <add>, %56, %cst_20 [1] : vector<8x16xf32> to vector<8xf32>
    %58 = vector.shape_cast %57 : vector<8xf32> to vector<8x1xf32>
    %cst_21 = arith.constant 9.52679634 : f32
    %59 = vector.broadcast %cst_21 : f32 to vector<8x1xf32>
    %60 = arith.mulf %59, %58 : vector<8x1xf32>
    %61 = arith.subf %50, %60 : vector<8x1xf32>
    %c0_22 = arith.constant 0 : index
    %c0_23 = arith.constant 0 : index
    %62 = vector.load %arg4[%c0_22, %c0_23] : memref<8x1xf32, #tpu.memory_space<vmem>>, vector<8x1xf32>
    tpu.vector_store %arg4[%c0_22, %c0_23], %61 {strides = array<i32>} : memref<8x1xf32, #tpu.memory_space<vmem>>, vector<8x1xf32>,
    %c0_24 = arith.constant 0 : index
    %c0_25 = arith.constant 0 : index
    %63 = vector.load %arg5[%c0_24, %c0_25] : memref<8x1xf32, #tpu.memory_space<vmem>>, vector<8x1xf32>
    tpu.vector_store %arg5[%c0_24, %c0_25], %6 {strides = array<i32>} : memref<8x1xf32, #tpu.memory_space<vmem>>, vector<8x1xf32>,
    return
  }
  func.func @transform_0(%arg0: i32) -> (i32, i32) {
    %c0_i32 = arith.constant 0 : i32
    %c0_i32_0 = arith.constant 0 : i32
    return %arg0, %c0_i32 : i32, i32
  }
  func.func @transform_1(%arg0: i32) -> (i32, i32) {
    %c0_i32 = arith.constant 0 : i32
    %c0_i32_0 = arith.constant 0 : i32
    return %arg0, %c0_i32 : i32, i32
  }
  func.func @transform_2(%arg0: i32) -> (i32, i32) {
    %c0_i32 = arith.constant 0 : i32
    %c0_i32_0 = arith.constant 0 : i32
    return %arg0, %c0_i32 : i32, i32
  }
  func.func @transform_3(%arg0: i32) -> (i32, i32) {
    %c0_i32 = arith.constant 0 : i32
    %c0_i32_0 = arith.constant 0 : i32
    return %arg0, %c0_i32 : i32, i32
  }
  func.func @transform_4(%arg0: i32) -> (i32, i32) {
    %c0_i32 = arith.constant 0 : i32
    %c0_i32_0 = arith.constant 0 : i32
    return %arg0, %c0_i32 : i32, i32
  }
}

</mosaic_0001>

<llo_original>
// kernel: tpu_custom_call.1
$region0: #{tpu_custom_call.1}
  #allocation0 [shape = 'u32[]', space=smem, size = 0x4, offset = 0x4, fixed_abs, tag = 'smem constant byte address 0x4 - core index']
  #allocation1 [shape = 'u32[72,128]{1,0:T(1,128)}', space=vmem, size = 0x9000, scoped, tag = 'internal scratch']
  %s0 = inlined_call_operand.vmem [shape: f32[8,16], index: 0, kind: input, shape index: {}]
  %s1 = inlined_call_operand.vmem [shape: f32[8,1], index: 1, kind: input, shape index: {}]
  %s2 = inlined_call_operand.vmem [shape: s32[8,1], index: 2, kind: input, shape index: {}]
  %s3 = inlined_call_operand.vmem [shape: f32[8,1], index: 3, kind: output, shape index: {0}]
  %s4 = inlined_call_operand.vmem [shape: f32[8,1], index: 4, kind: output, shape index: {1}]
  %5 = xla_tuple %s3, %s4
  %s6 = sld [smem:[#allocation0]]
  $region30: #{tpu_custom_call.1} parent=0
    _
  %s8 = ssub.s32 1, %s6
  %s9 = scalar_select 0, %s8, %s6
  // Predicated region
  $region2: #{tpu_custom_call.1} parent=0 // pred_check
    _
  $region3: #{tpu_custom_call.1} parent=0 // pred_check_branch
    %11 = sbr.rel (0) target = $region5
  $region4: #{tpu_custom_call.1} parent=0 // pred_region
    _
  $region5: #{tpu_custom_call.1} parent=0 // pred_fallthru
    _
  // Predicated region
  $region6: #{tpu_custom_call.1} parent=0 // pred_check
    _
  $region7: #{tpu_custom_call.1} parent=0 // pred_check_branch
    %13 = sbr.rel (0) target = $region9
  $region8: #{tpu_custom_call.1} parent=0 // pred_region
    _
  $region9: #{tpu_custom_call.1} parent=0 // pred_fallthru
    _
  // Predicated region
  $region10: #{tpu_custom_call.1} parent=0 // pred_check
    _
  $region11: #{tpu_custom_call.1} parent=0 // pred_check_branch
    %15 = sbr.rel (0) target = $region13
  $region12: #{tpu_custom_call.1} parent=0 // pred_region
    _
  $region13: #{tpu_custom_call.1} parent=0 // pred_fallthru
    _
  %v16 = vld [vmem:[%s0] sm:$0xff]
  %v17 = vld [vmem:[%s1] sm:$0xff]
  %19 = vset.pattern.permute.xlu0 0
  %20 = vperm.xlu0 %19, %v17
  %v21 = vpop.permute.xlu0 %20
  %v23 = vadd.f32 %v16, %v21
  %v24 = vmul.f32 %v23, 1.442695
  %v25 = vpow.pop %v24
  %vm26 = vcmask 130048
  %v27 = vsel %vm26, %v25, 0.0
  %28 = vadd.xlane.f32.xlu0 %v27
  %v29 = vpop.xlane.xlu0 %28
  %v30 = vadd.f32 %v25, 1e-08
  %v31 = vadd.f32 %v30, 1.0
  %v32 = vmul.f32 %v30, %v31
  %v33 = vlog2.pop %v32
  %v34 = vmul.f32 %v33, 0.6931472
  %v35 = vadd.f32 %v30, 2.0
  %v36 = vadd.f32 %v30, 3.0
  %v37 = vmul.f32 %v35, %v36
  %v38 = vlog2.pop %v37
  %v39 = vmul.f32 %v38, 0.6931472
  %v40 = vadd.f32 %v34, %v39
  %v41 = vadd.f32 %v30, 4.0
  %v42 = vrcp.pop %v41
  %v43 = vmul.f32 %v42, %v42
  %v44 = vmul.f32 %v43, 0.0005952381
  %v45 = vsub.f32 0.0007936508, %v44
  %v46 = vmul.f32 %v43, %v45
  %v47 = vadd.f32 %v46, -0.0027777778
  %v48 = vmul.f32 %v43, %v47
  %v49 = vadd.f32 %v48, 0.083333336
  %v50 = vmul.f32 %v42, %v49
  %v51 = vsub.f32 %v41, 0.5
  %v52 = vlog2.pop %v41
  %v53 = vmul.f32 %v52, 0.6931472
  %v54 = vmul.f32 %v51, %v53
  %v55 = vsub.f32 %v54, %v41
  %v56 = vadd.f32 %v55, 0.9189385
  %v57 = vadd.f32 %v56, %v50
  %v58 = vsub.f32 %v57, %v40
  %v59 = vsel %vm26, %v58, 0.0
  %60 = vadd.xlane.f32.xlu0 %v59
  %v61 = vpop.xlane.xlu0 %60
  %v62 = vmul.f32 %v29, -9.695339
  %v63 = vsub.f32 -45.547657, %v62
  %v64 = vadd.f32 %v61, %v63
  %v65 = vld [vmem:[%s2] sm:$0xff]
  %v66 = vlaneseq
  %v67 = vand.u32 %v66, 127
  %68 = vset.pattern.permute.xlu0 0
  %69 = vperm.xlu0 %68, %v65
  %v70 = vpop.permute.xlu0 %69
  %vm71 = vcmp.eq.s32.totalorder %v67, %v70
  %v72 = vsel %vm71, %v25, 0.0
  %v73 = vsel %vm26, %v72, 0.0
  %74 = vadd.xlane.f32.xlu0 %v73
  %v75 = vpop.xlane.xlu0 %74
  %v76 = vmul.f32 %v75, 9.526796
  %v77 = vsub.f32 %v64, %v76
  %vm78 = vcmask 7168
  %79 = vst.msk [vmem:[%s3] sm:$0xff] %vm78, %v77
  %80 = vst.msk [vmem:[%s4] sm:$0xff] %vm78, %v29
  // Predicated region
  $region14: #{tpu_custom_call.1} parent=0 // pred_check
    _
  $region15: #{tpu_custom_call.1} parent=0 // pred_check_branch
    %82 = sbr.rel (0) target = $region17
  $region16: #{tpu_custom_call.1} parent=0 // pred_region
    _
  $region17: #{tpu_custom_call.1} parent=0 // pred_fallthru
    _
  // Predicated region
  $region18: #{tpu_custom_call.1} parent=0 // pred_check
    _
  $region19: #{tpu_custom_call.1} parent=0 // pred_check_branch
    %84 = sbr.rel (0) target = $region21
  $region20: #{tpu_custom_call.1} parent=0 // pred_region
    _
  $region21: #{tpu_custom_call.1} parent=0 // pred_fallthru
    _
  // Predicated region
  $region22: #{tpu_custom_call.1} parent=0 // pred_check
    _
  $region23: #{tpu_custom_call.1} parent=0 // pred_check_branch
    %86 = sbr.rel (0) target = $region25
  $region24: #{tpu_custom_call.1} parent=0 // pred_region
    _
  $region25: #{tpu_custom_call.1} parent=0 // pred_fallthru
    _
  // Predicated region
  $region26: #{tpu_custom_call.1} parent=0 // pred_check
    _
  $region27: #{tpu_custom_call.1} parent=0 // pred_check_branch
    %88 = sbr.rel (0) target = $region29
  $region28: #{tpu_custom_call.1} parent=0 // pred_region
    _
  $region29: #{tpu_custom_call.1} parent=0 // pred_fallthru
    _

</llo_original>
